<compile_context>
chip_gen: v7x
topology: tpu7x:2x2x1
jax: 0.10.0
libtpu: 0.0.40
codegen_flags: <defaults>
</compile_context>

<pallas_src>
import functools

import jax
import jax.numpy as jnp
from jax.experimental import pallas as pl
from jax.experimental.pallas import tpu as pltpu


def _round_up(v, m):
    return (v + m - 1) // m * m


def _elu_f32(x):
    """ELU(alpha=1) in f32.  Negative branch = expm1 via Kahan's exp/log
    identity (~1 ulp), built only from primitives with guaranteed Mosaic
    lowerings (exp, log, where)."""
    xneg = jnp.minimum(x, 0.0)
    u = jnp.exp(xneg)
    em1 = jnp.where(u == 1.0, xneg,
                    jnp.where(u == 0.0, -1.0, (u - 1.0) * xneg / jnp.log(u)))
    return jnp.where(x > 0.0, x, em1)


# ----------------------------------------------------------------------------
# Pallas kernel: ChebConv(K) + ELU + Pool for one block of Bb batches,
# with the batch block folded into the lane dimension.
# ----------------------------------------------------------------------------
def _enblock_kernel(x_ref, lap_ref, w_ref, b_ref, down_ref, out_ref, *, K):
    # x_ref   : [N, P]     node-major slab, lanes = (batch, Cin), zero-padded
    # lap_ref : [N, N]     scaled Laplacian  L_hat = -D^{-1/2} A D^{-1/2}
    # w_ref   : [K*P, Q]   batch-block-diagonal Chebyshev weights (padded)
    # b_ref   : [1, Q]     bias tiled over the batch block (f32, padded)
    # down_ref: [M, N]     dense down_transform
    # out_ref : [M, Q]     pooled output slab, lanes = (batch, Cout), padded
    f32 = jnp.float32
    cdt = x_ref.dtype                      # MXU operand dtype (bf16 or f32)

    lap = lap_ref[...]
    t0 = x_ref[...]

    # Chebyshev recurrence for the whole batch block at once:
    #   T0 = X, T1 = L X, T_k = 2 L T_{k-1} - T_{k-2}
    terms = [t0]
    if K > 1:
        t_prev = t0.astype(f32)
        t_cur = jnp.dot(lap, t0, preferred_element_type=f32)
        terms.append(t_cur.astype(cdt))
        for _ in range(2, K):
            t_next = 2.0 * jnp.dot(lap, t_cur.astype(cdt),
                                   preferred_element_type=f32) - t_prev
            terms.append(t_next.astype(cdt))
            t_prev, t_cur = t_cur, t_next

    # Fused ChebConv: one matmul with contraction dim K*P.  The lane concat is
    # of 128-aligned slabs, so no masked relayouts are needed.
    t_cat = terms[0] if K == 1 else jnp.concatenate(terms, axis=1)
    h = jnp.dot(t_cat, w_ref[...], preferred_element_type=f32)      # [N, Q]

    # bias + ELU in f32 on the VPU/EUP (padded lanes stay exactly 0).
    act = _elu_f32(h + b_ref[...])

    # Pool: [M, N] @ [N, Q]; lane-dense [M, Q] store.
    out_ref[...] = jnp.dot(down_ref[...], act.astype(cdt),
                           preferred_element_type=f32).astype(out_ref.dtype)


def enblock_forward(x, lap, weight, bias, down, *,
                    compute_dtype=jnp.bfloat16, batch_block=None):
    """x: [B, N, Cin], lap: [N, N], weight: [K, Cin, Cout], bias: [Cout],
    down: [M, N]  ->  [B, M, Cout] (in x.dtype).

    compute_dtype: dtype fed to the MXU (bf16 fast path; f32 matches the
    PyTorch float32 numerics).  Accumulation is always f32.
    batch_block:   number of batches folded per grid step (default: all)."""
    B, N, Cin = x.shape
    K, _, Cout = weight.shape
    M = down.shape[0]
    out_dtype = x.dtype

    Bb = B if batch_block is None else int(batch_block)
    assert B % Bb == 0, "batch_block must divide the batch size"
    nblk = B // Bb

    # Lane-padded slab widths (multiples of 128 -> aligned concat, unmasked
    # stores, and legal lane-blocking of the x/out slabs for any Bb).
    P = _round_up(Bb * Cin, 128)
    Q = _round_up(Bb * Cout, 128)

    # ---- layout plumbing (plain JAX, outside the kernel hot path) ----------
    # x slab: xw[n, i*P + a*Cin + c] = x[i*Bb + a, n, c]
    xw = jnp.transpose(x, (1, 0, 2)).reshape(N, nblk, Bb * Cin)
    xw = jnp.pad(xw, ((0, 0), (0, 0), (0, P - Bb * Cin)))
    xw = xw.reshape(N, nblk * P).astype(compute_dtype)

    lap_c = lap.astype(compute_dtype)
    down_c = down.astype(compute_dtype)

    # Batch-block-diagonal Chebyshev weight: row (k, a, c), col (b, o),
    # nonzero iff a == b.  One matmul then handles all K orders and all Bb
    # batches with zero in-kernel transposes/reshapes.
    eye_b = jnp.eye(Bb, dtype=jnp.float32)
    w_bd = jnp.einsum("kco,ab->kacbo", weight.astype(jnp.float32), eye_b)
    w_bd = w_bd.reshape(K, Bb * Cin, Bb * Cout)
    w_bd = jnp.pad(w_bd, ((0, 0), (0, P - Bb * Cin), (0, Q - Bb * Cout)))
    w_bd = w_bd.reshape(K * P, Q).astype(compute_dtype)

    bias_bd = jnp.tile(bias.astype(jnp.float32), (Bb,))
    bias_bd = jnp.pad(bias_bd, (0, Q - Bb * Cout)).reshape(1, Q)

    # ---- VMEM / cost hints --------------------------------------------------
    cd_it = jnp.dtype(compute_dtype).itemsize
    out_it = jnp.dtype(out_dtype).itemsize
    block_bytes = (N * P * cd_it + N * N * cd_it + K * P * Q * cd_it
                   + Q * 4 + M * N * cd_it + M * Q * out_it)
    vmem_limit = int(min(64 * 1024 * 1024, 2 * block_bytes + 8 * 1024 * 1024))
    flops = int(nblk * (2 * (K - 1) * N * N * P        # Chebyshev recurrence
                        + 2 * N * (K * P) * Q          # fused conv matmul
                        + 2 * M * N * Q))              # pool matmul
    transcendentals = int(nblk * N * Q * 2)            # exp + log in the ELU
    bytes_accessed = int(xw.size * cd_it + lap_c.size * cd_it
                         + w_bd.size * cd_it + bias_bd.size * 4
                         + down_c.size * cd_it + M * nblk * Q * out_it)

    kernel = functools.partial(_enblock_kernel, K=K)
    out2d = pl.pallas_call(
        kernel,
        out_shape=jax.ShapeDtypeStruct((M, nblk * Q), out_dtype),
        grid_spec=pltpu.PrefetchScalarGridSpec(
            num_scalar_prefetch=0,
            grid=(nblk,),
            in_specs=[
                pl.BlockSpec((N, P), lambda i: (0, i)),          # x slab
                pl.BlockSpec((N, N), lambda i: (0, 0)),          # lap (invariant)
                pl.BlockSpec((K * P, Q), lambda i: (0, 0)),      # weights (inv.)
                pl.BlockSpec((1, Q), lambda i: (0, 0)),          # bias (inv.)
                pl.BlockSpec((M, N), lambda i: (0, 0)),          # down (inv.)
            ],
            out_specs=pl.BlockSpec((M, Q), lambda i: (0, i)),
        ),
        compiler_params=pltpu.CompilerParams(
            dimension_semantics=("parallel",),   # batch blocks independent (v7x 2-TC)
            vmem_limit_bytes=vmem_limit),
        cost_estimate=pl.CostEstimate(flops=flops,
                                      transcendentals=transcendentals,
                                      bytes_accessed=bytes_accessed),
    )(xw, lap_c, w_bd, bias_bd, down_c)

    # [M, nblk*Q] -> [B, M, Cout]
    out = out2d.reshape(M, nblk, Q)[:, :, :Bb * Cout]
    out = out.reshape(M, nblk, Bb, Cout)
    return jnp.transpose(out, (1, 2, 0, 3)).reshape(B, M, Cout)


# ----------------------------------------------------------------------------
# Plain-JAX glue: graph construction, scaled Laplacian, dense down_transform
# ----------------------------------------------------------------------------
def ring_edge_index(n):
    src = jnp.arange(n)
    dst = (src + 1) % n
    row = jnp.concatenate([src, dst])      # undirected ring: both directions
    col = jnp.concatenate([dst, src])
    return jnp.stack([row, col])           # [2, 2n]


def scaled_laplacian_dense(edge_index, n):
    # L_hat = 2L/lambda_max - I with L = I - D^{-1/2} A D^{-1/2}, lambda_max=2
    #       = -D^{-1/2} A D^{-1/2}   (matches PyG ChebConv normalization)
    row, col = edge_index
    adj = jnp.zeros((n, n), jnp.float32).at[row, col].add(1.0)
    deg = adj.sum(axis=1)
    dinv = jnp.where(deg > 0, 1.0 / jnp.sqrt(deg), 0.0)
    return -(dinv[:, None] * adj * dinv[None, :])


def dense_down_transform(m, n):
    # synthetic sparse pooling transform: node m averages input nodes 2m, 2m+1
    rows = jnp.repeat(jnp.arange(m), 2)
    cols = jnp.arange(2 * m) % n
    vals = jnp.full((2 * m,), 0.5, jnp.float32)
    return jnp.zeros((m, n), jnp.float32).at[rows, cols].add(vals)


def reference_forward(x, lap, weight, bias, down):
    """Pure-JAX reference of Enblock.forward for validation."""
    K = weight.shape[0]
    tx0 = x
    out = jnp.einsum("bnc,co->bno", tx0, weight[0])
    if K > 1:
        tx1 = jnp.einsum("mn,bnc->bmc", lap, tx0)
        out = out + jnp.einsum("bnc,co->bno", tx1, weight[1])
        for k in range(2, K):
            tx2 = 2.0 * jnp.einsum("mn,bnc->bmc", lap, tx1) - tx0
            out = out + jnp.einsum("bnc,co->bno", tx2, weight[k])
            tx0, tx1 = tx1, tx2
    out = out + bias[None, None, :]
    out = jnp.where(out > 0.0, out, jnp.expm1(jnp.minimum(out, 0.0)))  # ELU
    return jnp.einsum("mn,bno->bmo", down, out)                        # Pool


# ----------------------------------------------------------------------------
if __name__ == "__main__":
    B, N, Cin, Cout, K, M = 2, 16, 8, 16, 3, 8

    key = jax.random.PRNGKey(0)
    kx, kw = jax.random.split(key)
    x = jax.random.normal(kx, (B, N, Cin), jnp.float32)

    # deterministic init matching Enblock.reset_parameters:
    # xavier_uniform on the ChebConv weight, zeros on the bias.
    bound = (6.0 / (Cin + Cout)) ** 0.5
    weight = jax.random.uniform(kw, (K, Cin, Cout), jnp.float32,
                                minval=-bound, maxval=bound)
    bias = jnp.zeros((Cout,), jnp.float32)

    edge_index = ring_edge_index(N)
    lap = scaled_laplacian_dense(edge_index, N)
    down = dense_down_transform(M, N)

    ref = reference_forward(x, lap, weight, bias, down)

    # 1) exact float32 path (matches the PyTorch module's numerics)
    out_f32 = jax.block_until_ready(
        enblock_forward(x, lap, weight, bias, down,
                        compute_dtype=jnp.float32))
    assert out_f32.shape == (B, M, Cout)
    assert jnp.allclose(out_f32, ref, atol=1e-4, rtol=1e-4), "f32 mismatch"

    # 2) bf16 MXU fast path (f32 accumulation); compare against the reference
    #    evaluated on bf16-rounded inputs.
    out_bf16 = jax.block_until_ready(
        enblock_forward(x, lap, weight, bias, down,
                        compute_dtype=jnp.bfloat16))
    c = lambda a: a.astype(jnp.bfloat16).astype(jnp.float32)
    ref_bf16 = reference_forward(c(x), c(lap), c(weight), bias, c(down))
    assert jnp.allclose(out_bf16, ref_bf16, atol=5e-2, rtol=5e-2), "bf16 mismatch"

    # 3) multi-step grid (one batch per step) exercising the "parallel" axis.
    out_blk = jax.block_until_ready(
        enblock_forward(x, lap, weight, bias, down,
                        compute_dtype=jnp.float32, batch_block=1))
    assert jnp.allclose(out_blk, ref, atol=1e-4, rtol=1e-4), "blocked mismatch"

    print("KERNEL_OK")
</pallas_src>

<mosaic_0001>
module attributes {stable_mosaic.version = 11 : i64} {
  func.func @_enblock_kernel(%arg0: i32, %arg1: memref<16x128xf32, #tpu.memory_space<vmem>>, %arg2: memref<16x16xf32, #tpu.memory_space<vmem>>, %arg3: memref<384x128xf32, #tpu.memory_space<vmem>>, %arg4: memref<1x128xf32, #tpu.memory_space<vmem>>, %arg5: memref<8x16xf32, #tpu.memory_space<vmem>>, %arg6: memref<8x128xf32, #tpu.memory_space<vmem>>) attributes {dimension_semantics = [#tpu.dimension_semantics<parallel>], iteration_bounds = array<i64: 1>, scalar_prefetch = 0 : i64, scratch_operands = 0 : i64, tpu.core_type = #tpu.core_type<tc>, window_params = [{transform_indices = @transform_0, window_bounds = array<i64: 16, 128>}, {pipeline_mode = #tpu.pipeline_mode<synchronous>, transform_indices = @transform_1, window_bounds = array<i64: 16, 16>}, {pipeline_mode = #tpu.pipeline_mode<synchronous>, transform_indices = @transform_2, window_bounds = array<i64: 384, 128>}, {pipeline_mode = #tpu.pipeline_mode<synchronous>, transform_indices = @transform_3, window_bounds = array<i64: 1, 128>}, {pipeline_mode = #tpu.pipeline_mode<synchronous>, transform_indices = @transform_4, window_bounds = array<i64: 8, 16>}, {transform_indices = @transform_5, window_bounds = array<i64: 8, 128>}]} {
    %c0 = arith.constant 0 : index
    %c0_0 = arith.constant 0 : index
    %0 = vector.load %arg2[%c0, %c0_0] : memref<16x16xf32, #tpu.memory_space<vmem>>, vector<16x16xf32>
    %c0_1 = arith.constant 0 : index
    %c0_2 = arith.constant 0 : index
    %1 = vector.load %arg1[%c0_1, %c0_2] : memref<16x128xf32, #tpu.memory_space<vmem>>, vector<16x128xf32>
    %cst = arith.constant dense<0.000000e+00> : vector<16x128xf32>
    %2 = tpu.matmul %0, %1, %cst {dimension_numbers = #tpu.dot_dimension_numbers<[1], [0], [0], [1], [0, 0, 1, 1], [], []>} : vector<16x16xf32>, vector<16x128xf32>, vector<16x128xf32> -> vector<16x128xf32>
    %cst_3 = arith.constant dense<0.000000e+00> : vector<16x128xf32>
    %3 = tpu.matmul %0, %2, %cst_3 {dimension_numbers = #tpu.dot_dimension_numbers<[1], [0], [0], [1], [0, 0, 1, 1], [], []>} : vector<16x16xf32>, vector<16x128xf32>, vector<16x128xf32> -> vector<16x128xf32>
    %cst_4 = arith.constant 2.000000e+00 : f32
    %4 = vector.broadcast %cst_4 : f32 to vector<16x128xf32>
    %5 = arith.mulf %4, %3 : vector<16x128xf32>
    %6 = arith.subf %5, %1 : vector<16x128xf32>
    %7 = tpu.concatenate %1, %2, %6 in 1 : vector<16x128xf32>, vector<16x128xf32>, vector<16x128xf32> -> vector<16x384xf32>
    %c0_5 = arith.constant 0 : index
    %c0_6 = arith.constant 0 : index
    %8 = vector.load %arg3[%c0_5, %c0_6] : memref<384x128xf32, #tpu.memory_space<vmem>>, vector<384x128xf32>
    %cst_7 = arith.constant dense<0.000000e+00> : vector<16x128xf32>
    %9 = tpu.matmul %7, %8, %cst_7 {dimension_numbers = #tpu.dot_dimension_numbers<[1], [0], [0], [1], [0, 0, 1, 1], [], []>} : vector<16x384xf32>, vector<384x128xf32>, vector<16x128xf32> -> vector<16x128xf32>
    %c0_8 = arith.constant 0 : index
    %c0_9 = arith.constant 0 : index
    %10 = vector.load %arg4[%c0_8, %c0_9] : memref<1x128xf32, #tpu.memory_space<vmem>>, vector<1x128xf32>
    %11 = vector.broadcast %10 : vector<1x128xf32> to vector<16x128xf32>
    %12 = arith.addf %9, %11 : vector<16x128xf32>
    %cst_10 = arith.constant 0.000000e+00 : f32
    %13 = vector.broadcast %cst_10 : f32 to vector<16x128xf32>
    %14 = arith.minimumf %12, %13 : vector<16x128xf32>
    %15 = math.exp %14 : vector<16x128xf32>
    %cst_11 = arith.constant 1.000000e+00 : f32
    %16 = vector.broadcast %cst_11 : f32 to vector<16x128xf32>
    %17 = arith.cmpf oeq, %15, %16 : vector<16x128xf32>
    %cst_12 = arith.constant 0.000000e+00 : f32
    %18 = vector.broadcast %cst_12 : f32 to vector<16x128xf32>
    %19 = arith.cmpf oeq, %15, %18 : vector<16x128xf32>
    %cst_13 = arith.constant 1.000000e+00 : f32
    %20 = vector.broadcast %cst_13 : f32 to vector<16x128xf32>
    %21 = arith.subf %15, %20 : vector<16x128xf32>
    %22 = arith.mulf %21, %14 : vector<16x128xf32>
    %23 = math.log %15 : vector<16x128xf32>
    %24 = arith.divf %22, %23 : vector<16x128xf32>
    %cst_14 = arith.constant -1.000000e+00 : f32
    %25 = vector.broadcast %cst_14 : f32 to vector<16x128xf32>
    %26 = arith.select %19, %25, %24 : vector<16x128xi1>, vector<16x128xf32>
    %27 = arith.select %17, %14, %26 : vector<16x128xi1>, vector<16x128xf32>
    %cst_15 = arith.constant 0.000000e+00 : f32
    %28 = vector.broadcast %cst_15 : f32 to vector<16x128xf32>
    %29 = arith.cmpf ogt, %12, %28 : vector<16x128xf32>
    %30 = arith.select %29, %12, %27 : vector<16x128xi1>, vector<16x128xf32>
    %c0_16 = arith.constant 0 : index
    %c0_17 = arith.constant 0 : index
    %31 = vector.load %arg5[%c0_16, %c0_17] : memref<8x16xf32, #tpu.memory_space<vmem>>, vector<8x16xf32>
    %cst_18 = arith.constant dense<0.000000e+00> : vector<8x128xf32>
    %32 = tpu.matmul %31, %30, %cst_18 {dimension_numbers = #tpu.dot_dimension_numbers<[1], [0], [0], [1], [0, 0, 1, 1], [], []>} : vector<8x16xf32>, vector<16x128xf32>, vector<8x128xf32> -> vector<8x128xf32>
    %c0_19 = arith.constant 0 : index
    %c0_20 = arith.constant 0 : index
    %33 = vector.load %arg6[%c0_19, %c0_20] : memref<8x128xf32, #tpu.memory_space<vmem>>, vector<8x128xf32>
    tpu.vector_store %arg6[%c0_19, %c0_20], %32 {strides = array<i32>} : memref<8x128xf32, #tpu.memory_space<vmem>>, vector<8x128xf32>,
    return
  }
  func.func @transform_0(%arg0: i32) -> (i32, i32) {
    %c0_i32 = arith.constant 0 : i32
    %c0_i32_0 = arith.constant 0 : i32
    return %c0_i32, %arg0 : i32, i32
  }
  func.func @transform_1(%arg0: i32) -> (i32, i32) {
    %c0_i32 = arith.constant 0 : i32
    %c0_i32_0 = arith.constant 0 : i32
    %c0_i32_1 = arith.constant 0 : i32
    return %c0_i32, %c0_i32_0 : i32, i32
  }
  func.func @transform_2(%arg0: i32) -> (i32, i32) {
    %c0_i32 = arith.constant 0 : i32
    %c0_i32_0 = arith.constant 0 : i32
    %c0_i32_1 = arith.constant 0 : i32
    return %c0_i32, %c0_i32_0 : i32, i32
  }
  func.func @transform_3(%arg0: i32) -> (i32, i32) {
    %c0_i32 = arith.constant 0 : i32
    %c0_i32_0 = arith.constant 0 : i32
    %c0_i32_1 = arith.constant 0 : i32
    return %c0_i32, %c0_i32_0 : i32, i32
  }
  func.func @transform_4(%arg0: i32) -> (i32, i32) {
    %c0_i32 = arith.constant 0 : i32
    %c0_i32_0 = arith.constant 0 : i32
    %c0_i32_1 = arith.constant 0 : i32
    return %c0_i32, %c0_i32_0 : i32, i32
  }
  func.func @transform_5(%arg0: i32) -> (i32, i32) {
    %c0_i32 = arith.constant 0 : i32
    %c0_i32_0 = arith.constant 0 : i32
    return %c0_i32, %arg0 : i32, i32
  }
}

</mosaic_0001>

<llo_original>
// kernel: tpu_custom_call.1
$region0: #{tpu_custom_call.1}
  #allocation0 [shape = 'u32[]', space=smem, size = 0x4, offset = 0x4, fixed_abs, tag = 'smem constant byte address 0x4 - core index']
  #allocation1 [shape = 'u32[144,128]{1,0:T(1,128)}', space=vmem, size = 0x12000, scoped, tag = 'internal scratch']
  %s0 = inlined_call_operand.hbm [shape: f32[16,128], index: 0, kind: input, shape index: {}]
  %s1 = inlined_call_operand.hbm [shape: f32[16,16], index: 1, kind: input, shape index: {}]
  %s2 = inlined_call_operand.hbm [shape: f32[384,128], index: 2, kind: input, shape index: {}]
  %s3 = inlined_call_operand.vmem [shape: f32[1,128], index: 3, kind: input, shape index: {}]
  %s4 = inlined_call_operand.vmem [shape: f32[8,16], index: 4, kind: input, shape index: {}]
  %s5 = inlined_call_operand.hbm [shape: f32[8,128], index: 5, kind: output, shape index: {}]
  %s6 = sld [smem:[#allocation0]]
  $region42: #{tpu_custom_call.1} parent=0
    _
  %s8 = ssub.s32 1, %s6
  %s9 = scalar_select 0, %s8, %s6
  $region1: #{tpu_custom_call.1} parent=0
    #allocation2 [shape = 'u8[8192]{0}', space=vmem, size = 0x2000, scoped, tag = 'input window, operand 0, single buffered']
    #allocation3 [shape = 's32[1]{0}', space=sflag, size = 0x4, scoped, tag = 'scoped memory for tpu_custom_call.1']
    #allocation4 [shape = 's32[1]{0}', space=sflag, size = 0x4, scoped, tag = 'scoped memory for tpu_custom_call.1']
    #allocation5 [shape = 'u8[8192]{0}', space=vmem, size = 0x2000, scoped, tag = 'input window, operand 1, single buffered']
    #allocation6 [shape = 's32[1]{0}', space=sflag, size = 0x4, scoped, tag = 'scoped memory for tpu_custom_call.1']
    #allocation7 [shape = 'u8[196608]{0}', space=vmem, size = 0x30000, scoped, tag = 'input window, operand 2, single buffered']
    #allocation8 [shape = 'u8[4096]{0}', space=vmem, size = 0x1000, scoped, tag = 'output window, operand 0, single buffered']
    %10 = vsyncpa [#allocation3], 0
    %11 = vsyncpa [#allocation6], 0
    %12 = vsyncpa [#allocation4], 0
    // Predicated region
    $region2: #{tpu_custom_call.1} parent=1 // pred_check
      _
    $region3: #{tpu_custom_call.1} parent=1 // pred_check_branch
      %14 = sbr.rel (0) target = $region5
    $region4: #{tpu_custom_call.1} parent=1 // pred_region
      %s16 = ssub.s32 256, 256
      %17 = vsyncadd [#allocation3], %s16
      %s18 = sshll.u32 [#allocation2], 4
      %s19 = int_to_ptr.vmem [resolvable:$true] %s18
      %24 = dma.hbm_to_vmem [thread:$0]  %s0, 256, %s19, [#allocation3], 128, 128, 8
    $region5: #{tpu_custom_call.1} parent=1 // pred_fallthru
      _
    // Predicated region
    $region6: #{tpu_custom_call.1} parent=1 // pred_check
      _
    $region7: #{tpu_custom_call.1} parent=1 // pred_check_branch
      %26 = sbr.rel (0) target = $region9
    $region8: #{tpu_custom_call.1} parent=1 // pred_region
      %s28 = ssub.s32 256, 256
      %29 = vsyncadd [#allocation6], %s28
      %s30 = sshll.u32 [#allocation5], 4
      %s31 = int_to_ptr.vmem [resolvable:$true] %s30
      %36 = dma.hbm_to_vmem [thread:$0]  %s1, 256, %s31, [#allocation6], 128, 128, 8
    $region9: #{tpu_custom_call.1} parent=1 // pred_fallthru
      _
    // Predicated region
    $region10: #{tpu_custom_call.1} parent=1 // pred_check
      _
    $region11: #{tpu_custom_call.1} parent=1 // pred_check_branch
      %38 = sbr.rel (0) target = $region13
    $region12: #{tpu_custom_call.1} parent=1 // pred_region
      %s40 = ssub.s32 6144, 6144
      %41 = vsyncadd [#allocation6], %s40
      %s42 = sshll.u32 [#allocation7], 4
      %s43 = int_to_ptr.vmem [resolvable:$true] %s42
      %48 = dma.hbm_to_vmem [thread:$0]  %s2, 6144, %s43, [#allocation6], 128, 128, 8
    $region13: #{tpu_custom_call.1} parent=1 // pred_fallthru
      _
    // Predicated region
    $region14: #{tpu_custom_call.1} parent=1 // pred_check
      _
    $region15: #{tpu_custom_call.1} parent=1 // pred_check_branch
      %50 = sbr.rel (0) target = $region17
    $region16: #{tpu_custom_call.1} parent=1 // pred_region
      _
    $region17: #{tpu_custom_call.1} parent=1 // pred_fallthru
      _
    // Predicated region
    $region18: #{tpu_custom_call.1} parent=1 // pred_check
      _
    $region19: #{tpu_custom_call.1} parent=1 // pred_check_branch
      %52 = sbr.rel (0) target = $region21
    $region20: #{tpu_custom_call.1} parent=1 // pred_region
      _
    $region21: #{tpu_custom_call.1} parent=1 // pred_fallthru
      _
    // Predicated region
    $region22: #{tpu_custom_call.1} parent=1 // pred_check
      _
    $region23: #{tpu_custom_call.1} parent=1 // pred_check_branch
      %54 = sbr.rel (0) target = $region25
    $region24: #{tpu_custom_call.1} parent=1 // pred_region
      %55 = dma.done [#allocation3], 256
    $region25: #{tpu_custom_call.1} parent=1 // pred_fallthru
      _
    // Predicated region
    $region26: #{tpu_custom_call.1} parent=1 // pred_check
      _
    $region27: #{tpu_custom_call.1} parent=1 // pred_check_branch
      %57 = sbr.rel (0) target = $region29
    $region28: #{tpu_custom_call.1} parent=1 // pred_region
      %58 = dma.done [#allocation6], 256
    $region29: #{tpu_custom_call.1} parent=1 // pred_fallthru
      _
    // Predicated region
    $region30: #{tpu_custom_call.1} parent=1 // pred_check
      _
    $region31: #{tpu_custom_call.1} parent=1 // pred_check_branch
      %60 = sbr.rel (0) target = $region33
    $region32: #{tpu_custom_call.1} parent=1 // pred_region
      %61 = dma.done [#allocation6], 6144
    $region33: #{tpu_custom_call.1} parent=1 // pred_fallthru
      _
    %v62 = vld [vmem:[#allocation5] sm:$0xff]
    %v63 = vld [vmem:[#allocation5 + $0x8] sm:$0xff]
    %v64 = vld [vmem:[#allocation2] sm:$0xff]
    %v65 = vld [vmem:[#allocation2 + $0x8] sm:$0xff]
    %vm66 = vcmask 130048
    %v68 = vsel %vm66, %v62, 0
    %v71 = vsel %vm66, %v63, 0
    %73 = vmatprep.subr.mxu0 0.0
    %74 = vmatpush1.msra.mxu0 %v64
    %75 = vmatprep.subr.mxu0 0.0
    %76 = vmatpush1.msra.mxu0 %v65
    %77 = vmatprep.subr.mxu0 0.0
    %78 = vmatpush1.msra.mxu0 0.0
    %79 = vmatprep.subr.mxu0 0.0
    %80 = vmatpush1.msra.mxu0 0.0
    %81 = vmatprep.subr.mxu0 0.0
    %82 = vmatpush1.msra.mxu0 0.0
    %83 = vmatprep.subr.mxu0 0.0
    %84 = vmatpush1.msra.mxu0 0.0
    %85 = vmatprep.subr.mxu0 0.0
    %86 = vmatpush1.msra.mxu0 0.0
    %87 = vmatprep.subr.mxu0 0.0
    %88 = vmatpush1.msra.mxu0 0.0
    %89 = vmatprep.subr.mxu0 0.0
    %90 = vmatpush1.msra.mxu0 0.0
    %91 = vmatprep.subr.mxu0 0.0
    %92 = vmatpush1.msra.mxu0 0.0
    %93 = vmatprep.subr.mxu0 0.0
    %94 = vmatpush1.msra.mxu0 0.0
    %95 = vmatprep.subr.mxu0 0.0
    %96 = vmatpush1.msra.mxu0 0.0
    %97 = vmatprep.subr.mxu0 0.0
    %98 = vmatpush1.msra.mxu0 0.0
    %99 = vmatprep.subr.mxu0 0.0
    %100 = vmatpush1.msra.mxu0 0.0
    %101 = vmatprep.subr.mxu0 0.0
    %102 = vmatpush1.msra.mxu0 0.0
    %103 = vmatprep.subr.mxu0 0.0
    %104 = vmatpush1.msra.mxu0 0.0
    %105 = vmatprep.subr.mxu0 0.0
    %106 = vmatpush1.msra.mxu0 0.0
    %107 = vmatprep.subr.mxu0 0.0
    %108 = vmatpush1.msra.mxu0 0.0
    %109 = vmatprep.subr.mxu0 0.0
    %110 = vmatpush1.msra.mxu0 0.0
    %111 = vmatprep.subr.mxu0 0.0
    %112 = vmatpush1.msra.mxu0 0.0
    %113 = vmatprep.subr.mxu0 0.0
    %114 = vmatpush1.msra.mxu0 0.0
    %115 = vmatprep.subr.mxu0 0.0
    %116 = vmatpush1.msra.mxu0 0.0
    %117 = vmatprep.subr.mxu0 0.0
    %118 = vmatpush1.msra.mxu0 0.0
    %119 = vmatprep.subr.mxu0 0.0
    %120 = vmatpush1.msra.mxu0 0.0
    %121 = vmatprep.subr.mxu0 0.0
    %122 = vmatpush1.msra.mxu0 0.0
    %123 = vmatprep.subr.mxu0 0.0
    %124 = vmatpush1.msra.mxu0 0.0
    %125 = vmatprep.subr.mxu0 0.0
    %126 = vmatpush1.msra.mxu0 0.0
    %127 = vmatprep.subr.mxu0 0.0
    %128 = vmatpush1.msra.mxu0 0.0
    %129 = vmatprep.subr.mxu0 0.0
    %130 = vmatpush1.msra.mxu0 0.0
    %131 = vmatprep.subr.mxu0 0.0
    %132 = vmatpush1.msra.mxu0 0.0
    %133 = vmatprep.subr.mxu0 0.0
    %134 = vmatpush1.msra.mxu0 0.0
    %135 = vmatprep.subr.mxu0 0.0
    %136 = vmatpush1.msra.mxu0 0.0
    %137 = vmatprep.mubr.f32.mxu0 0.0
    %138 = vmatmul.mubr.f32.gmra.mrb[0].mxu0 %v68
    %v139 = vpop.f32.mrb[0].mxu0
    %v140 = vadd.f32 0.0, %v139
    %v141 = vpop.f32.mrb[0].mxu0
    %142 = vmatprep.mubr.f32.mxu0 0.0
    %143 = vmatmul.mubr.f32.gmra.mrb[0].mxu0 %v71
    %v144 = vpop.f32.mrb[0].mxu0
    %v145 = vadd.f32 0.0, %v144
    %v146 = vpop.f32.mrb[0].mxu0
    %147 = vdwg.mxu0
    %148 = vmatprep.subr.mxu0 0.0
    %149 = vmatpush1.msra.mxu0 %v140
    %150 = vmatprep.subr.mxu0 0.0
    %151 = vmatpush1.msra.mxu0 %v145
    %152 = vmatprep.subr.mxu0 0.0
    %153 = vmatpush1.msra.mxu0 0.0
    %154 = vmatprep.subr.mxu0 0.0
    %155 = vmatpush1.msra.mxu0 0.0
    %156 = vmatprep.subr.mxu0 0.0
    %157 = vmatpush1.msra.mxu0 0.0
    %158 = vmatprep.subr.mxu0 0.0
    %159 = vmatpush1.msra.mxu0 0.0
    %160 = vmatprep.subr.mxu0 0.0
    %161 = vmatpush1.msra.mxu0 0.0
    %162 = vmatprep.subr.mxu0 0.0
    %163 = vmatpush1.msra.mxu0 0.0
    %164 = vmatprep.subr.mxu0 0.0
    %165 = vmatpush1.msra.mxu0 0.0
    %166 = vmatprep.subr.mxu0 0.0
    %167 = vmatpush1.msra.mxu0 0.0
    %168 = vmatprep.subr.mxu0 0.0
    %169 = vmatpush1.msra.mxu0 0.0
    %170 = vmatprep.subr.mxu0 0.0
    %171 = vmatpush1.msra.mxu0 0.0
    %172 = vmatprep.subr.mxu0 0.0
    %173 = vmatpush1.msra.mxu0 0.0
    %174 = vmatprep.subr.mxu0 0.0
    %175 = vmatpush1.msra.mxu0 0.0
    %176 = vmatprep.subr.mxu0 0.0
    %177 = vmatpush1.msra.mxu0 0.0
    %178 = vmatprep.subr.mxu0 0.0
    %179 = vmatpush1.msra.mxu0 0.0
    %180 = vmatprep.subr.mxu0 0.0
    %181 = vmatpush1.msra.mxu0 0.0
    %182 = vmatprep.subr.mxu0 0.0
    %183 = vmatpush1.msra.mxu0 0.0
    %184 = vmatprep.subr.mxu0 0.0
    %185 = vmatpush1.msra.mxu0 0.0
    %186 = vmatprep.subr.mxu0 0.0
    %187 = vmatpush1.msra.mxu0 0.0
    %188 = vmatprep.subr.mxu0 0.0
    %189 = vmatpush1.msra.mxu0 0.0
    %190 = vmatprep.subr.mxu0 0.0
    %191 = vmatpush1.msra.mxu0 0.0
    %192 = vmatprep.subr.mxu0 0.0
    %193 = vmatpush1.msra.mxu0 0.0
    %194 = vmatprep.subr.mxu0 0.0
    %195 = vmatpush1.msra.mxu0 0.0
    %196 = vmatprep.subr.mxu0 0.0
    %197 = vmatpush1.msra.mxu0 0.0
    %198 = vmatprep.subr.mxu0 0.0
    %199 = vmatpush1.msra.mxu0 0.0
    %200 = vmatprep.subr.mxu0 0.0
    %201 = vmatpush1.msra.mxu0 0.0
    %202 = vmatprep.subr.mxu0 0.0
    %203 = vmatpush1.msra.mxu0 0.0
    %204 = vmatprep.subr.mxu0 0.0
    %205 = vmatpush1.msra.mxu0 0.0
    %206 = vmatprep.subr.mxu0 0.0
    %207 = vmatpush1.msra.mxu0 0.0
    %208 = vmatprep.subr.mxu0 0.0
    %209 = vmatpush1.msra.mxu0 0.0
    %210 = vmatprep.subr.mxu0 0.0
    %211 = vmatpush1.msra.mxu0 0.0
    %212 = vmatprep.mubr.f32.mxu0 0.0
    %213 = vmatmul.mubr.f32.gmra.mrb[0].mxu0 %v68
    %v214 = vpop.f32.mrb[0].mxu0
    %v215 = vadd.f32 0.0, %v214
    %v216 = vpop.f32.mrb[0].mxu0
    %217 = vmatprep.mubr.f32.mxu0 0.0
    %218 = vmatmul.mubr.f32.gmra.mrb[0].mxu0 %v71
    %v219 = vpop.f32.mrb[0].mxu0
    %v220 = vadd.f32 0.0, %v219
    %v221 = vpop.f32.mrb[0].mxu0
    %222 = vdwg.mxu0
    %v223 = vmul.f32 %v215, 2.0
    %v224 = vmul.f32 %v220, 2.0
    %v225 = vsub.f32 %v223, %v64
    %v226 = vsub.f32 %v224, %v65
    %v227 = vld [vmem:[#allocation7] sm:$0xff]
    %v228 = vld [vmem:[#allocation7 + $0x8] sm:$0xff]
    %v229 = vld [vmem:[#allocation7 + $0x10] sm:$0xff]
    %v230 = vld [vmem:[#allocation7 + $0x18] sm:$0xff]
    %v231 = vld [vmem:[#allocation7 + $0x20] sm:$0xff]
    %v232 = vld [vmem:[#allocation7 + $0x28] sm:$0xff]
    %v233 = vld [vmem:[#allocation7 + $0x30] sm:$0xff]
    %v234 = vld [vmem:[#allocation7 + $0x38] sm:$0xff]
    %v235 = vld [vmem:[#allocation7 + $0x40] sm:$0xff]
    %v236 = vld [vmem:[#allocation7 + $0x48] sm:$0xff]
    %v237 = vld [vmem:[#allocation7 + $0x50] sm:$0xff]
    %v238 = vld [vmem:[#allocation7 + $0x58] sm:$0xff]
    %v239 = vld [vmem:[#allocation7 + $0x60] sm:$0xff]
    %v240 = vld [vmem:[#allocation7 + $0x68] sm:$0xff]
    %v241 = vld [vmem:[#allocation7 + $0x70] sm:$0xff]
    %v242 = vld [vmem:[#allocation7 + $0x78] sm:$0xff]
    %v243 = vld [vmem:[#allocation7 + $0x80] sm:$0xff]
    %v244 = vld [vmem:[#allocation7 + $0x88] sm:$0xff]
    %v245 = vld [vmem:[#allocation7 + $0x90] sm:$0xff]
    %v246 = vld [vmem:[#allocation7 + $0x98] sm:$0xff]
    %v247 = vld [vmem:[#allocation7 + $0xa0] sm:$0xff]
    %v248 = vld [vmem:[#allocation7 + $0xa8] sm:$0xff]
    %v249 = vld [vmem:[#allocation7 + $0xb0] sm:$0xff]
    %v250 = vld [vmem:[#allocation7 + $0xb8] sm:$0xff]
    %v251 = vld [vmem:[#allocation7 + $0xc0] sm:$0xff]
    %v252 = vld [vmem:[#allocation7 + $0xc8] sm:$0xff]
    %v253 = vld [vmem:[#allocation7 + $0xd0] sm:$0xff]
    %v254 = vld [vmem:[#allocation7 + $0xd8] sm:$0xff]
    %v255 = vld [vmem:[#allocation7 + $0xe0] sm:$0xff]
    %v256 = vld [vmem:[#allocation7 + $0xe8] sm:$0xff]
    %v257 = vld [vmem:[#allocation7 + $0xf0] sm:$0xff]
    %v258 = vld [vmem:[#allocation7 + $0xf8] sm:$0xff]
    %v259 = vld [vmem:[#allocation7 + $0x100] sm:$0xff]
    %v260 = vld [vmem:[#allocation7 + $0x108] sm:$0xff]
    %v261 = vld [vmem:[#allocation7 + $0x110] sm:$0xff]
    %v262 = vld [vmem:[#allocation7 + $0x118] sm:$0xff]
    %v263 = vld [vmem:[#allocation7 + $0x120] sm:$0xff]
    %v264 = vld [vmem:[#allocation7 + $0x128] sm:$0xff]
    %v265 = vld [vmem:[#allocation7 + $0x130] sm:$0xff]
    %v266 = vld [vmem:[#allocation7 + $0x138] sm:$0xff]
    %v267 = vld [vmem:[#allocation7 + $0x140] sm:$0xff]
    %v268 = vld [vmem:[#allocation7 + $0x148] sm:$0xff]
    %v269 = vld [vmem:[#allocation7 + $0x150] sm:$0xff]
    %v270 = vld [vmem:[#allocation7 + $0x158] sm:$0xff]
    %v271 = vld [vmem:[#allocation7 + $0x160] sm:$0xff]
    %v272 = vld [vmem:[#allocation7 + $0x168] sm:$0xff]
    %v273 = vld [vmem:[#allocation7 + $0x170] sm:$0xff]
    %v274 = vld [vmem:[#allocation7 + $0x178] sm:$0xff]
    %v275 = vld [vmem:[%s3] sm:$0x1]
    %v277 = vlaneseq
    %v278 = vshrl.u32 %v277, 7
    %v279 = vsub.s32 0, %v278
    %v280 = vrot.slane %v275, %v279
    %282 = vmatprep.subr.mxu0 0.0
    %283 = vmatpush1.msra.mxu0 %v227
    %284 = vmatprep.subr.mxu0 0.0
    %285 = vmatpush1.msra.mxu0 %v228
    %286 = vmatprep.subr.mxu0 0.0
    %287 = vmatpush1.msra.mxu0 %v229
    %288 = vmatprep.subr.mxu0 0.0
    %289 = vmatpush1.msra.mxu0 %v230
    %290 = vmatprep.subr.mxu0 0.0
    %291 = vmatpush1.msra.mxu0 %v231
    %292 = vmatprep.subr.mxu0 0.0
    %293 = vmatpush1.msra.mxu0 %v232
    %294 = vmatprep.subr.mxu0 0.0
    %295 = vmatpush1.msra.mxu0 %v233
    %296 = vmatprep.subr.mxu0 0.0
    %297 = vmatpush1.msra.mxu0 %v234
    %298 = vmatprep.subr.mxu0 0.0
    %299 = vmatpush1.msra.mxu0 %v235
    %300 = vmatprep.subr.mxu0 0.0
    %301 = vmatpush1.msra.mxu0 %v236
    %302 = vmatprep.subr.mxu0 0.0
    %303 = vmatpush1.msra.mxu0 %v237
    %304 = vmatprep.subr.mxu0 0.0
    %305 = vmatpush1.msra.mxu0 %v238
    %306 = vmatprep.subr.mxu0 0.0
    %307 = vmatpush1.msra.mxu0 %v239
    %308 = vmatprep.subr.mxu0 0.0
    %309 = vmatpush1.msra.mxu0 %v240
    %310 = vmatprep.subr.mxu0 0.0
    %311 = vmatpush1.msra.mxu0 %v241
    %312 = vmatprep.subr.mxu0 0.0
    %313 = vmatpush1.msra.mxu0 %v242
    %314 = vmatprep.subr.mxu0 0.0
    %315 = vmatpush1.msra.mxu0 %v243
    %316 = vmatprep.subr.mxu0 0.0
    %317 = vmatpush1.msra.mxu0 %v244
    %318 = vmatprep.subr.mxu0 0.0
    %319 = vmatpush1.msra.mxu0 %v245
    %320 = vmatprep.subr.mxu0 0.0
    %321 = vmatpush1.msra.mxu0 %v246
    %322 = vmatprep.subr.mxu0 0.0
    %323 = vmatpush1.msra.mxu0 %v247
    %324 = vmatprep.subr.mxu0 0.0
    %325 = vmatpush1.msra.mxu0 %v248
    %326 = vmatprep.subr.mxu0 0.0
    %327 = vmatpush1.msra.mxu0 %v249
    %328 = vmatprep.subr.mxu0 0.0
    %329 = vmatpush1.msra.mxu0 %v250
    %330 = vmatprep.subr.mxu0 0.0
    %331 = vmatpush1.msra.mxu0 %v251
    %332 = vmatprep.subr.mxu0 0.0
    %333 = vmatpush1.msra.mxu0 %v252
    %334 = vmatprep.subr.mxu0 0.0
    %335 = vmatpush1.msra.mxu0 %v253
    %336 = vmatprep.subr.mxu0 0.0
    %337 = vmatpush1.msra.mxu0 %v254
    %338 = vmatprep.subr.mxu0 0.0
    %339 = vmatpush1.msra.mxu0 %v255
    %340 = vmatprep.subr.mxu0 0.0
    %341 = vmatpush1.msra.mxu0 %v256
    %342 = vmatprep.subr.mxu0 0.0
    %343 = vmatpush1.msra.mxu0 %v257
    %344 = vmatprep.subr.mxu0 0.0
    %345 = vmatpush1.msra.mxu0 %v258
    %346 = vmatprep.mubr.f32.mxu0 %v140
    %347 = vmatmul.mubr.f32.gmra.mrb[0].mxu0 %v64
    %v348 = vpop.f32.mrb[0].mxu0
    %v349 = vadd.f32 %v280, %v348
    %v350 = vpop.f32.mrb[0].mxu0
    %351 = vmatprep.mubr.f32.mxu0 %v145
    %352 = vmatmul.mubr.f32.gmra.mrb[0].mxu0 %v65
    %v353 = vpop.f32.mrb[0].mxu0
    %v354 = vadd.f32 %v280, %v353
    %v355 = vpop.f32.mrb[0].mxu0
    %356 = vdwg.mxu0
    %357 = vmatprep.subr.mxu0 0.0
    %358 = vmatpush1.msra.mxu0 %v259
    %359 = vmatprep.subr.mxu0 0.0
    %360 = vmatpush1.msra.mxu0 %v260
    %361 = vmatprep.subr.mxu0 0.0
    %362 = vmatpush1.msra.mxu0 %v261
    %363 = vmatprep.subr.mxu0 0.0
    %364 = vmatpush1.msra.mxu0 %v262
    %365 = vmatprep.subr.mxu0 0.0
    %366 = vmatpush1.msra.mxu0 %v263
    %367 = vmatprep.subr.mxu0 0.0
    %368 = vmatpush1.msra.mxu0 %v264
    %369 = vmatprep.subr.mxu0 0.0
    %370 = vmatpush1.msra.mxu0 %v265
    %371 = vmatprep.subr.mxu0 0.0
    %372 = vmatpush1.msra.mxu0 %v266
    %373 = vmatprep.subr.mxu0 0.0
    %374 = vmatpush1.msra.mxu0 %v267
    %375 = vmatprep.subr.mxu0 0.0
    %376 = vmatpush1.msra.mxu0 %v268
    %377 = vmatprep.subr.mxu0 0.0
    %378 = vmatpush1.msra.mxu0 %v269
    %379 = vmatprep.subr.mxu0 0.0
    %380 = vmatpush1.msra.mxu0 %v270
    %381 = vmatprep.subr.mxu0 0.0
    %382 = vmatpush1.msra.mxu0 %v271
    %383 = vmatprep.subr.mxu0 0.0
    %384 = vmatpush1.msra.mxu0 %v272
    %385 = vmatprep.subr.mxu0 0.0
    %386 = vmatpush1.msra.mxu0 %v273
    %387 = vmatprep.subr.mxu0 0.0
    %388 = vmatpush1.msra.mxu0 %v274
    %389 = vmatprep.subr.mxu0 0.0
    %390 = vmatpush1.msra.mxu0 0.0
    %391 = vmatprep.subr.mxu0 0.0
    %392 = vmatpush1.msra.mxu0 0.0
    %393 = vmatprep.subr.mxu0 0.0
    %394 = vmatpush1.msra.mxu0 0.0
    %395 = vmatprep.subr.mxu0 0.0
    %396 = vmatpush1.msra.mxu0 0.0
    %397 = vmatprep.subr.mxu0 0.0
    %398 = vmatpush1.msra.mxu0 0.0
    %399 = vmatprep.subr.mxu0 0.0
    %400 = vmatpush1.msra.mxu0 0.0
    %401 = vmatprep.subr.mxu0 0.0
    %402 = vmatpush1.msra.mxu0 0.0
    %403 = vmatprep.subr.mxu0 0.0
    %404 = vmatpush1.msra.mxu0 0.0
    %405 = vmatprep.subr.mxu0 0.0
    %406 = vmatpush1.msra.mxu0 0.0
    %407 = vmatprep.subr.mxu0 0.0
    %408 = vmatpush1.msra.mxu0 0.0
    %409 = vmatprep.subr.mxu0 0.0
    %410 = vmatpush1.msra.mxu0 0.0
    %411 = vmatprep.subr.mxu0 0.0
    %412 = vmatpush1.msra.mxu0 0.0
    %413 = vmatprep.subr.mxu0 0.0
    %414 = vmatpush1.msra.mxu0 0.0
    %415 = vmatprep.subr.mxu0 0.0
    %416 = vmatpush1.msra.mxu0 0.0
    %417 = vmatprep.subr.mxu0 0.0
    %418 = vmatpush1.msra.mxu0 0.0
    %419 = vmatprep.subr.mxu0 0.0
    %420 = vmatpush1.msra.mxu0 0.0
    %421 = vmatprep.mubr.f32.mxu0 0.0
    %422 = vmatmul.mubr.f32.gmra.mrb[0].mxu0 %v225
    %v423 = vpop.f32.mrb[0].mxu0
    %v424 = vadd.f32 %v349, %v423
    %v425 = vpop.f32.mrb[0].mxu0
    %426 = vmatprep.mubr.f32.mxu0 0.0
    %427 = vmatmul.mubr.f32.gmra.mrb[0].mxu0 %v226
    %v428 = vpop.f32.mrb[0].mxu0
    %v429 = vadd.f32 %v354, %v428
    %v430 = vpop.f32.mrb[0].mxu0
    %431 = vdwg.mxu0
    %v432 = vmin.f32 %v424, 0.0
    %v433 = vmin.f32 %v429, 0.0
    %v434 = vmul.f32 %v432, 1.442695
    %v435 = vpow.pop %v434
    %v436 = vmul.f32 %v433, 1.442695
    %v437 = vpow.pop %v436
    %vm438 = vcmp.eq.f32.partialorder %v435, 1.0
    %vm439 = vcmp.eq.f32.partialorder %v437, 1.0
    %vm440 = vcmp.eq.f32.partialorder %v435, 0.0
    %vm441 = vcmp.eq.f32.partialorder %v437, 0.0
    %v442 = vsub.f32 %v435, 1.0
    %v443 = vsub.f32 %v437, 1.0
    %v444 = vmul.f32 %v442, %v432
    %v445 = vmul.f32 %v443, %v433
    %v446 = vlog2.pop %v435
    %v447 = vmul.f32 %v446, 0.6931472
    %v448 = vlog2.pop %v437
    %v449 = vmul.f32 %v448, 0.6931472
    %v450 = vrcp.pop %v447
    %v451 = vmul.f32 %v444, %v450
    %v452 = vrcp.pop %v449
    %v453 = vmul.f32 %v445, %v452
    %v454 = vsel %vm440, -1.0, %v451
    %v455 = vsel %vm441, -1.0, %v453
    %v456 = vsel %vm438, %v432, %v454
    %v457 = vsel %vm439, %v433, %v455
    %vm458 = vcmp.gt.f32.partialorder %v424, 0.0
    %vm459 = vcmp.gt.f32.partialorder %v429, 0.0
    %v460 = vsel %vm458, %v424, %v456
    %v461 = vsel %vm459, %v429, %v457
    %v462 = vld [vmem:[%s4] sm:$0xff]
    %v464 = vsel %vm66, %v462, 0
    %466 = vmatprep.subr.mxu0 0.0
    %467 = vmatpush1.msra.mxu0 %v460
    %468 = vmatprep.subr.mxu0 0.0
    %469 = vmatpush1.msra.mxu0 %v461
    %470 = vmatprep.subr.mxu0 0.0
    %471 = vmatpush1.msra.mxu0 0.0
    %472 = vmatprep.subr.mxu0 0.0
    %473 = vmatpush1.msra.mxu0 0.0
    %474 = vmatprep.subr.mxu0 0.0
    %475 = vmatpush1.msra.mxu0 0.0
    %476 = vmatprep.subr.mxu0 0.0
    %477 = vmatpush1.msra.mxu0 0.0
    %478 = vmatprep.subr.mxu0 0.0
    %479 = vmatpush1.msra.mxu0 0.0
    %480 = vmatprep.subr.mxu0 0.0
    %481 = vmatpush1.msra.mxu0 0.0
    %482 = vmatprep.subr.mxu0 0.0
    %483 = vmatpush1.msra.mxu0 0.0
    %484 = vmatprep.subr.mxu0 0.0
    %485 = vmatpush1.msra.mxu0 0.0
    %486 = vmatprep.subr.mxu0 0.0
    %487 = vmatpush1.msra.mxu0 0.0
    %488 = vmatprep.subr.mxu0 0.0
    %489 = vmatpush1.msra.mxu0 0.0
    %490 = vmatprep.subr.mxu0 0.0
    %491 = vmatpush1.msra.mxu0 0.0
    %492 = vmatprep.subr.mxu0 0.0
    %493 = vmatpush1.msra.mxu0 0.0
    %494 = vmatprep.subr.mxu0 0.0
    %495 = vmatpush1.msra.mxu0 0.0
    %496 = vmatprep.subr.mxu0 0.0
    %497 = vmatpush1.msra.mxu0 0.0
    %498 = vmatprep.subr.mxu0 0.0
    %499 = vmatpush1.msra.mxu0 0.0
    %500 = vmatprep.subr.mxu0 0.0
    %501 = vmatpush1.msra.mxu0 0.0
    %502 = vmatprep.subr.mxu0 0.0
    %503 = vmatpush1.msra.mxu0 0.0
    %504 = vmatprep.subr.mxu0 0.0
    %505 = vmatpush1.msra.mxu0 0.0
    %506 = vmatprep.subr.mxu0 0.0
    %507 = vmatpush1.msra.mxu0 0.0
    %508 = vmatprep.subr.mxu0 0.0
    %509 = vmatpush1.msra.mxu0 0.0
    %510 = vmatprep.subr.mxu0 0.0
    %511 = vmatpush1.msra.mxu0 0.0
    %512 = vmatprep.subr.mxu0 0.0
    %513 = vmatpush1.msra.mxu0 0.0
    %514 = vmatprep.subr.mxu0 0.0
    %515 = vmatpush1.msra.mxu0 0.0
    %516 = vmatprep.subr.mxu0 0.0
    %517 = vmatpush1.msra.mxu0 0.0
    %518 = vmatprep.subr.mxu0 0.0
    %519 = vmatpush1.msra.mxu0 0.0
    %520 = vmatprep.subr.mxu0 0.0
    %521 = vmatpush1.msra.mxu0 0.0
    %522 = vmatprep.subr.mxu0 0.0
    %523 = vmatpush1.msra.mxu0 0.0
    %524 = vmatprep.subr.mxu0 0.0
    %525 = vmatpush1.msra.mxu0 0.0
    %526 = vmatprep.subr.mxu0 0.0
    %527 = vmatpush1.msra.mxu0 0.0
    %528 = vmatprep.subr.mxu0 0.0
    %529 = vmatpush1.msra.mxu0 0.0
    %530 = vmatprep.mubr.f32.mxu0 0.0
    %531 = vmatmul.mubr.f32.gmra.mrb[0].mxu0 %v464
    %v532 = vpop.f32.mrb[0].mxu0
    %v533 = vadd.f32 0.0, %v532
    %v534 = vpop.f32.mrb[0].mxu0
    %535 = vdwg.mxu0
    %536 = vst [vmem:[#allocation8] sm:$0xff] %v533
    // Predicated region
    $region34: #{tpu_custom_call.1} parent=1 // pred_check
      _
    $region35: #{tpu_custom_call.1} parent=1 // pred_check_branch
      %538 = sbr.rel (0) target = $region37
    $region36: #{tpu_custom_call.1} parent=1 // pred_region
      %s540 = ssub.s32 128, 128
      %541 = vsyncadd [#allocation4], %s540
      %s543 = sshll.u32 [#allocation8], 4
      %s544 = int_to_ptr.vmem [resolvable:$true] %s543
      %546 = dma.vmem_to_hbm [thread:$0]  %s544, 128, %s5, [#allocation4]
    $region37: #{tpu_custom_call.1} parent=1 // pred_fallthru
      _
    // Predicated region
    $region38: #{tpu_custom_call.1} parent=1 // pred_check
      _
    $region39: #{tpu_custom_call.1} parent=1 // pred_check_branch
      %548 = sbr.rel (0) target = $region41
    $region40: #{tpu_custom_call.1} parent=1 // pred_region
      %549 = dma.done [#allocation4], 128
    $region41: #{tpu_custom_call.1} parent=1 // pred_fallthru
      _
    %550 = vsyncpa [#allocation3], 1
    %551 = vsyncpa [#allocation6], 1
    %552 = vsyncpa [#allocation4], 1

</llo_original>
